<compile_context>
chip_gen: v5e
topology: v5e:2x2
jax: 0.10.0
libtpu: 0.0.40
codegen_flags: <defaults>
</compile_context>

<pallas_src>
import jax
import jax.numpy as jnp
from jax.experimental import pallas as pl
from jax.experimental.pallas import tpu as pltpu


# ---------------- configuration (small, consistent with the module) ----------
class conf:
    num_users = 10
    num_items = 12
    att_dim = 32
    aspect_dim = 16
    hidden_dim = 32
    word_dim = 32      # only used by the (unused-in-forward) GRU
    dropout = 0.5      # unused in forward


_EMB = 2 * conf.att_dim + 2 * conf.aspect_dim      # 96  packed-embedding width
_X0 = 128                                          # logit section start (lane-aligned)
_BIAS_ROW = conf.num_users + conf.num_items        # 22
_ROWS = ((_BIAS_ROW + 1 + 7) // 8) * 8             # 24  (sublane-padded table rows)
_TBL_W = _X0 + 2 * conf.hidden_dim                 # 192 table width
_OUT_W = _EMB + conf.hidden_dim                    # 128 lane-dense output width


# ------------------------------ Pallas kernel --------------------------------
def _encoder_kernel(idx_ref, tbl_ref, out_ref):
    B = out_ref.shape[0]
    Rp = tbl_ref.shape[0]
    H = conf.hidden_dim

    idx = idx_ref[...]                                       # (B, 2) int32
    iota = jax.lax.broadcasted_iota(jnp.int32, (B, Rp), 1)

    # One-hot "gather matrix": user row + item row + bias row, all disjoint.
    m = ((iota == idx[:, 0:1]).astype(jnp.float32)
         + (iota == idx[:, 1:2]).astype(jnp.float32)
         + (iota == _BIAS_ROW).astype(jnp.float32))          # (B, Rp)

    # Single MXU pass: embedding gathers + both linears + bias in one matmul.
    g = jnp.dot(m, tbl_ref[...], preferred_element_type=jnp.float32)  # (B, 192)

    t = jnp.tanh(g[:, _X0:_X0 + 2 * H])                      # (B, 64)
    h = t[:, :H] + t[:, H:]                                  # u + v   (B, 32)

    # One full-width (128-lane) store -> single unmasked writeback DMA.
    out_ref[...] = jnp.concatenate([g[:, :_EMB], h], axis=1)


def encoder_pallas(comb_idx, table):
    B = comb_idx.shape[0]
    vmem = pl.BlockSpec(memory_space=pltpu.MemorySpace.VMEM)
    return pl.pallas_call(
        _encoder_kernel,
        out_shape=jax.ShapeDtypeStruct((B, _OUT_W), jnp.float32),
        in_specs=[vmem, vmem],
        out_specs=vmem,
    )(comb_idx, table)


# ------------------------------ parameters -----------------------------------
def init_params(key):
    ks = jax.random.split(key, 6)

    def xavier(k, shape):
        fan_in, fan_out = shape[1], shape[0]
        std = (2.0 / (fan_in + fan_out)) ** 0.5
        return std * jax.random.normal(k, shape, dtype=jnp.float32)

    A, P, H = conf.att_dim, conf.aspect_dim, conf.hidden_dim
    nu, ni = conf.num_users, conf.num_items

    gamma_user = xavier(ks[0], (nu, A))
    gamma_item = xavier(ks[1], (ni, A))
    beta_user = xavier(ks[2], (nu, P))
    beta_item = xavier(ks[3], (ni, P))
    w3 = xavier(ks[4], (H, 2 * A))          # PyTorch layout (out, in)
    b3 = jnp.zeros((H,), jnp.float32)
    w4 = xavier(ks[5], (H, 2 * P))
    b4 = jnp.zeros((H,), jnp.float32)

    # ---- one-time packing: embeddings + pre-computed linear logits ----------
    # Row layout (width 192):
    #   [gu(32) | gi(32) | bu(16) | bi(16) | pad(32) | s1=W3-logits(32) | s2=W4-logits(32)]
    tbl = jnp.zeros((_ROWS, _TBL_W), jnp.float32)
    # user rows 0..nu-1
    tbl = tbl.at[0:nu, 0:A].set(gamma_user)
    tbl = tbl.at[0:nu, 2 * A:2 * A + P].set(beta_user)
    tbl = tbl.at[0:nu, _X0:_X0 + H].set(gamma_user @ w3[:, :A].T)
    tbl = tbl.at[0:nu, _X0 + H:_X0 + 2 * H].set(beta_user @ w4[:, :P].T)
    # item rows nu..nu+ni-1
    tbl = tbl.at[nu:nu + ni, A:2 * A].set(gamma_item)
    tbl = tbl.at[nu:nu + ni, 2 * A + P:2 * A + 2 * P].set(beta_item)
    tbl = tbl.at[nu:nu + ni, _X0:_X0 + H].set(gamma_item @ w3[:, A:].T)
    tbl = tbl.at[nu:nu + ni, _X0 + H:_X0 + 2 * H].set(beta_item @ w4[:, P:].T)
    # bias row (zeros in the embedding section so it never perturbs x)
    tbl = tbl.at[_BIAS_ROW, _X0:_X0 + H].set(b3)
    tbl = tbl.at[_BIAS_ROW, _X0 + H:_X0 + 2 * H].set(b4)

    params = {
        # raw (PyTorch-layout) parameters — used only by the reference check
        "gamma_user": gamma_user, "gamma_item": gamma_item,
        "beta_user": beta_user, "beta_item": beta_item,
        "w3": w3, "b3": b3, "w4": w4, "b4": b4,
        # pre-packed parameter consumed by the Pallas kernel
        "table_packed": tbl,
    }
    # TODO(synk): nn.GRU / nn.Dropout are constructed in __init__ but never
    # used in forward(); they are intentionally not instantiated here.
    return params


# ------------------------------ forward wrapper -------------------------------
def encoder_1_forward(params, user, item):
    B = user.shape[0]
    A, P, H = conf.att_dim, conf.aspect_dim, conf.hidden_dim
    # item ids are offset into the combined table; indices packed as (B, 2).
    comb_idx = jnp.stack(
        [user.astype(jnp.int32), item.astype(jnp.int32) + conf.num_users], axis=1)

    slab = encoder_pallas(comb_idx, params["table_packed"])   # (B, 128)

    gamma_u = slab[:, 0:A]
    gamma_i = slab[:, A:2 * A]
    beta_u = slab[:, 2 * A:2 * A + P]
    beta_i = slab[:, 2 * A + P:2 * A + 2 * P]
    hidden_state = slab[:, _EMB:_EMB + H].reshape(1, B, H)     # .view(1, B, H)
    return gamma_u, gamma_i, beta_u, beta_i, hidden_state


# ------------------------------ reference check -------------------------------
def encoder_1_reference(params, user, item):
    gamma_u = params["gamma_user"][user]
    gamma_i = params["gamma_item"][item]
    beta_u = params["beta_user"][user]
    beta_i = params["beta_item"][item]
    u = jnp.tanh(jnp.concatenate([gamma_u, gamma_i], 1) @ params["w3"].T + params["b3"])
    v = jnp.tanh(jnp.concatenate([beta_u, beta_i], 1) @ params["w4"].T + params["b4"])
    return (gamma_u, gamma_i, beta_u, beta_i,
            (u + v).reshape(1, user.shape[0], conf.hidden_dim))


if __name__ == "__main__":
    key = jax.random.PRNGKey(0)
    pkey, ukey, ikey = jax.random.split(key, 3)
    params = init_params(pkey)

    B = 8   # keep batch a multiple of 8 (sublane-aligned)
    user = jax.random.randint(ukey, (B,), 0, conf.num_users, dtype=jnp.int32)
    item = jax.random.randint(ikey, (B,), 0, conf.num_items, dtype=jnp.int32)

    outs = encoder_1_forward(params, user, item)
    outs = jax.block_until_ready(outs)

    refs = encoder_1_reference(params, user, item)
    for o, r in zip(outs, refs):
        assert o.shape == r.shape, (o.shape, r.shape)
        assert jnp.allclose(o, r, atol=1e-5, rtol=1e-5)

    print("KERNEL_OK")
</pallas_src>

<mosaic_0001>
module attributes {stable_mosaic.version = 11 : i64} {
  func.func @_encoder_kernel(%arg0: memref<8x2xi32, #tpu.memory_space<vmem>>, %arg1: memref<24x192xf32, #tpu.memory_space<vmem>>, %arg2: memref<8x128xf32, #tpu.memory_space<vmem>>) attributes {dimension_semantics = [], scalar_prefetch = 0 : i64, scratch_operands = 0 : i64, tpu.core_type = #tpu.core_type<tc>} {
    %c0 = arith.constant 0 : index
    %c0_0 = arith.constant 0 : index
    %0 = vector.load %arg0[%c0, %c0_0] : memref<8x2xi32, #tpu.memory_space<vmem>>, vector<8x2xi32>
    %1 = tpu.iota {dimensions = array<i32: 1>} : vector<8x24xi32>
    %2 = vector.extract_strided_slice %0 {offsets = [0, 0], sizes = [8, 1], strides = [1, 1]} : vector<8x2xi32> to vector<8x1xi32>
    %3 = vector.broadcast %2 : vector<8x1xi32> to vector<8x24xi32>
    %4 = arith.cmpi eq, %1, %3 : vector<8x24xi32>
    %5 = arith.extui %4 : vector<8x24xi1> to vector<8x24xi32>
    %6 = arith.sitofp %5 : vector<8x24xi32> to vector<8x24xf32>
    %7 = vector.extract_strided_slice %0 {offsets = [0, 1], sizes = [8, 1], strides = [1, 1]} : vector<8x2xi32> to vector<8x1xi32>
    %8 = vector.broadcast %7 : vector<8x1xi32> to vector<8x24xi32>
    %9 = arith.cmpi eq, %1, %8 : vector<8x24xi32>
    %10 = arith.extui %9 : vector<8x24xi1> to vector<8x24xi32>
    %11 = arith.sitofp %10 : vector<8x24xi32> to vector<8x24xf32>
    %12 = arith.addf %6, %11 : vector<8x24xf32>
    %c22_i32 = arith.constant 22 : i32
    %13 = vector.broadcast %c22_i32 : i32 to vector<8x24xi32>
    %14 = arith.cmpi eq, %1, %13 : vector<8x24xi32>
    %15 = arith.extui %14 : vector<8x24xi1> to vector<8x24xi32>
    %16 = arith.sitofp %15 : vector<8x24xi32> to vector<8x24xf32>
    %17 = arith.addf %12, %16 : vector<8x24xf32>
    %c0_1 = arith.constant 0 : index
    %c0_2 = arith.constant 0 : index
    %18 = vector.load %arg1[%c0_1, %c0_2] : memref<24x192xf32, #tpu.memory_space<vmem>>, vector<24x192xf32>
    %cst = arith.constant dense<0.000000e+00> : vector<8x192xf32>
    %19 = tpu.matmul %17, %18, %cst {dimension_numbers = #tpu.dot_dimension_numbers<[1], [0], [0], [1], [0, 0, 1, 1], [], []>} : vector<8x24xf32>, vector<24x192xf32>, vector<8x192xf32> -> vector<8x192xf32>
    %20 = vector.extract_strided_slice %19 {offsets = [0, 128], sizes = [8, 64], strides = [1, 1]} : vector<8x192xf32> to vector<8x64xf32>
    %21 = math.tanh %20 : vector<8x64xf32>
    %22 = vector.extract_strided_slice %21 {offsets = [0, 0], sizes = [8, 32], strides = [1, 1]} : vector<8x64xf32> to vector<8x32xf32>
    %23 = vector.extract_strided_slice %21 {offsets = [0, 32], sizes = [8, 32], strides = [1, 1]} : vector<8x64xf32> to vector<8x32xf32>
    %24 = arith.addf %22, %23 : vector<8x32xf32>
    %25 = vector.extract_strided_slice %19 {offsets = [0, 0], sizes = [8, 96], strides = [1, 1]} : vector<8x192xf32> to vector<8x96xf32>
    %26 = tpu.concatenate %25, %24 in 1 : vector<8x96xf32>, vector<8x32xf32> -> vector<8x128xf32>
    %c0_3 = arith.constant 0 : index
    %c0_4 = arith.constant 0 : index
    %27 = vector.load %arg2[%c0_3, %c0_4] : memref<8x128xf32, #tpu.memory_space<vmem>>, vector<8x128xf32>
    tpu.vector_store %arg2[%c0_3, %c0_4], %26 {strides = array<i32>} : memref<8x128xf32, #tpu.memory_space<vmem>>, vector<8x128xf32>,
    return
  }
}

</mosaic_0001>

<llo_original>
// kernel: tpu_custom_call.1
$region0: #{tpu_custom_call.1}
  #allocation0 [shape = 'u32[]', space=smem, size = 0x4, offset = 0x4, fixed_abs, tag = 'smem constant byte address 0x4 - core index']
  #allocation1 [shape = 'u32[72,128]{1,0:T(1,128)}', space=vmem, size = 0x9000, scoped, tag = 'internal scratch']
  %s0 = inlined_call_operand.vmem [shape: s32[8,2], index: 0, kind: input, shape index: {}]
  %s1 = inlined_call_operand.hbm [shape: f32[24,192], index: 1, kind: input, shape index: {}]
  %s2 = inlined_call_operand.hbm [shape: f32[8,128], index: 2, kind: output, shape index: {}]
  %s3 = sld [smem:[#allocation0]]
  $region22: #{tpu_custom_call.1} parent=0
    _
  %s5 = ssub.s32 1, %s3
  %s6 = scalar_select 0, %s5, %s3
  $region1: #{tpu_custom_call.1} parent=0
    #allocation2 [shape = 'u8[24576]{0}', space=vmem, size = 0x6000, scoped, tag = 'input window, operand 1, single buffered']
    #allocation3 [shape = 's32[1]{0}', space=sflag, size = 0x4, scoped, tag = 'scoped memory for tpu_custom_call.1']
    #allocation4 [shape = 's32[1]{0}', space=sflag, size = 0x4, scoped, tag = 'scoped memory for tpu_custom_call.1']
    #allocation5 [shape = 'u8[4096]{0}', space=vmem, size = 0x1000, scoped, tag = 'output window, operand 0, single buffered']
    %7 = vsyncpa [#allocation3], 0
    %8 = vsyncpa [#allocation4], 0
    // Predicated region
    $region2: #{tpu_custom_call.1} parent=1 // pred_check
      _
    $region3: #{tpu_custom_call.1} parent=1 // pred_check_branch
      %10 = sbr.rel (0) target = $region5
    $region4: #{tpu_custom_call.1} parent=1 // pred_region
      _
    $region5: #{tpu_custom_call.1} parent=1 // pred_fallthru
      _
    // Predicated region
    $region6: #{tpu_custom_call.1} parent=1 // pred_check
      _
    $region7: #{tpu_custom_call.1} parent=1 // pred_check_branch
      %12 = sbr.rel (0) target = $region9
    $region8: #{tpu_custom_call.1} parent=1 // pred_region
      %14 = vsyncadd [#allocation3], 0
      %s15 = sshll.u32 %s1, 4
      %s16 = int_to_ptr.hbm [resolvable:$true] %s15
      %s17 = sshll.u32 [#allocation2], 4
      %s18 = int_to_ptr.vmem [resolvable:$true] %s17
      %23 = dma.hbm_to_vmem [thread:$0]  %s16, 768, %s18, [#allocation3], 256, 256, 16
    $region9: #{tpu_custom_call.1} parent=1 // pred_fallthru
      _
    // Predicated region
    $region10: #{tpu_custom_call.1} parent=1 // pred_check
      _
    $region11: #{tpu_custom_call.1} parent=1 // pred_check_branch
      %25 = sbr.rel (0) target = $region13
    $region12: #{tpu_custom_call.1} parent=1 // pred_region
      %27 = dma.done [#allocation3], 768
    $region13: #{tpu_custom_call.1} parent=1 // pred_fallthru
      _
    %v28 = vld [vmem:[%s0] sm:$0xff]
    %v29 = vlaneseq
    %v30 = vand.u32 %v29, 127
    %31 = vset.pattern.permute.xlu0 0
    %32 = vperm.xlu0 %31, %v28
    %v33 = vpop.permute.xlu0 %32
    %vm34 = vcmp.eq.s32.totalorder %v30, %v33
    %v35 = vsel %vm34, 1, 0
    %v36 = vcvt.s32.f32 %v35
    %37 = vset.pattern.permute.xlu0 1
    %38 = vperm.xlu0 %37, %v28
    %v39 = vpop.permute.xlu0 %38
    %vm40 = vcmp.eq.s32.totalorder %v30, %v39
    %v41 = vsel %vm40, 1, 0
    %v42 = vcvt.s32.f32 %v41
    %v43 = vadd.f32 %v36, %v42
    %vm44 = vcmp.eq.s32.totalorder %v30, 22
    %v45 = vsel %vm44, 1, 0
    %v46 = vcvt.s32.f32 %v45
    %v47 = vadd.f32 %v43, %v46
    %v48 = vld [vmem:[#allocation2] sm:$0xff]
    %v49 = vld [vmem:[#allocation2 + $0x8] sm:$0xff]
    %v50 = vld [vmem:[#allocation2 + $0x10] sm:$0xff]
    %v51 = vld [vmem:[#allocation2 + $0x18] sm:$0xff]
    %v52 = vld [vmem:[#allocation2 + $0x20] sm:$0xff]
    %v53 = vld [vmem:[#allocation2 + $0x28] sm:$0xff]
    %vm54 = vcmask 195584
    %v56 = vsel %vm54, %v47, 0
    %58 = vmatpush.msra.mxu0 0.0
    %59 = vmatpush.msra.mxu0 0.0
    %60 = vmatpush.msra.mxu0 0.0
    %61 = vmatpush.msra.mxu0 0.0
    %62 = vmatpush.msra.mxu0 0.0
    %63 = vmatpush.msra.mxu0 0.0
    %64 = vmatpush.msra.mxu0 0.0
    %65 = vmatpush.msra.mxu0 0.0
    %66 = vmatpush.msra.mxu0 0.0
    %67 = vmatpush.msra.mxu0 0.0
    %68 = vmatpush.msra.mxu0 0.0
    %69 = vmatpush.msra.mxu0 0.0
    %70 = vmatpush.msra.mxu0 0.0
    %71 = vmatpush.msra.mxu0 %v52
    %72 = vmatpush.msra.mxu0 %v50
    %73 = vmatpush.msra.mxu0 %v48
    %74 = vmatmul.f32.gmra.mxu0 %v56
    %v75 = vpop.f32.mrf.mxu0
    %v76 = vadd.f32 0.0, %v75
    %77 = vdwg.mxu0
    %78 = vmatpush.msra.mxu0 0.0
    %79 = vmatpush.msra.mxu0 0.0
    %80 = vmatpush.msra.mxu0 0.0
    %81 = vmatpush.msra.mxu0 0.0
    %82 = vmatpush.msra.mxu0 0.0
    %83 = vmatpush.msra.mxu0 0.0
    %84 = vmatpush.msra.mxu0 0.0
    %85 = vmatpush.msra.mxu0 0.0
    %86 = vmatpush.msra.mxu0 0.0
    %87 = vmatpush.msra.mxu0 0.0
    %88 = vmatpush.msra.mxu0 0.0
    %89 = vmatpush.msra.mxu0 0.0
    %90 = vmatpush.msra.mxu0 0.0
    %91 = vmatpush.msra.mxu0 %v53
    %92 = vmatpush.msra.mxu0 %v51
    %93 = vmatpush.msra.mxu0 %v49
    %94 = vmatmul.f32.gmra.mxu0 %v56
    %v95 = vpop.f32.mrf.mxu0
    %v96 = vadd.f32 0.0, %v95
    %97 = vdwg.mxu0
    %v98 = vtanh.pop %v96
    %100 = vrot.lane.b32.xlu0 %v98, 96
    %v101 = vpop.permute.xlu0 %100
    %v103 = vadd.f32 %v98, %v101
    %105 = vrot.lane.b32.xlu0 %v103, 96
    %v106 = vpop.permute.xlu0 %105
    %vm108 = vcmask 785408
    %v109 = vsel %vm108, %v76, %v106
    %110 = vst [vmem:[#allocation5] sm:$0xff] %v109
    // Predicated region
    $region14: #{tpu_custom_call.1} parent=1 // pred_check
      _
    $region15: #{tpu_custom_call.1} parent=1 // pred_check_branch
      %112 = sbr.rel (0) target = $region17
    $region16: #{tpu_custom_call.1} parent=1 // pred_region
      %114 = vsyncadd [#allocation4], 0
      %s116 = sshll.u32 [#allocation5], 4
      %s117 = int_to_ptr.vmem [resolvable:$true] %s116
      %s118 = sshll.u32 %s2, 4
      %s119 = int_to_ptr.hbm [resolvable:$true] %s118
      %121 = dma.vmem_to_hbm [thread:$0]  %s117, 128, %s119, [#allocation4]
    $region17: #{tpu_custom_call.1} parent=1 // pred_fallthru
      _
    // Predicated region
    $region18: #{tpu_custom_call.1} parent=1 // pred_check
      _
    $region19: #{tpu_custom_call.1} parent=1 // pred_check_branch
      %123 = sbr.rel (0) target = $region21
    $region20: #{tpu_custom_call.1} parent=1 // pred_region
      %125 = dma.done [#allocation4], 128
    $region21: #{tpu_custom_call.1} parent=1 // pred_fallthru
      _
    %126 = vsyncpa [#allocation3], 1
    %127 = vsyncpa [#allocation4], 1

</llo_original>
